<compile_context>
chip_gen: v7x
topology: tpu7x:2x2x1
jax: 0.10.0
libtpu: 0.0.40
codegen_flags: <defaults>
</compile_context>

<pallas_src>
import functools

import jax
import jax.numpy as jnp
from jax import lax
from jax.experimental import pallas as pl
from jax.experimental.pallas import tpu as pltpu

_EPS = 1e-5


def _round_up(x, m):
    return ((x + m - 1) // m) * m


def _lane_granularity():
    """MXU-friendly feature padding: 256 lanes on v6e/v7x, 128 otherwise."""
    try:
        kind = jax.devices()[0].device_kind.lower()
    except Exception:
        return 128
    if "tpu" not in kind:
        return 128
    for old in ("v2", "v3", "v4", "v5"):
        if old in kind:
            return 128
    return 256


def _usable_vmem_bytes():
    """Generation-aware usable VMEM (leave headroom for compiler scratch)."""
    try:
        cap = int(pltpu.get_tpu_info().vmem_capacity_bytes)
    except Exception:
        cap = 64 * 1024 * 1024  # conservative (v7x-sized) fallback
    return int(cap * 0.85)


def _pick_tile_m(n, d_max_pad):
    """Batch tile: 256-512 rows when possible, shrunk so the per-tile
    activation working set stays small enough for v7x's 64 MiB VMEM."""
    n16 = _round_up(max(int(n), 1), 16)
    tile = min(512, n16)
    while tile > 16 and tile * d_max_pad * 12 > (24 << 20):
        tile //= 2
    return max(16, (tile // 16) * 16)


def _vmem_limit_bytes(tile_m, d_in, d_out, affine_in, want_stats, out_itemsize):
    """Exact per-layer working-set accounting + 50% margin, clamped per chip."""
    resident = d_in * d_out * 2 + d_out * 4            # bf16 weight + f32 bias
    if affine_in:
        resident += 2 * d_in * 4                       # scale / shift
    stream = 2 * tile_m * d_in * 2                     # double-buffered bf16 x
    stream += 2 * tile_m * d_out * out_itemsize        # double-buffered y
    if want_stats:
        stream += 4 * d_out * 4                        # sum / sumsq outputs
    temps = tile_m * d_in * 4 + 3 * tile_m * d_out * 4  # in-kernel f32 temps
    limit = int((resident + stream + temps) * 1.5) + (2 << 20)
    limit = max(limit, 32 << 20)
    return int(min(limit, _usable_vmem_bytes()))


def _make_layer_kernel(affine_in, relu_out, want_stats, tile_m, n_extra):
    """One fused layer: [x*scale+shift] -> matmul+bias -> [ReLU] and, when the
    next layer has a BatchNorm, accumulate per-feature sum / sum-of-squares of
    the ReLU'd output across batch tiles (two-phase BN, phase 1 fused here)."""

    def kernel(*refs):
        idx = 0
        x_ref = refs[idx]; idx += 1
        if affine_in:
            scale_ref = refs[idx]; shift_ref = refs[idx + 1]; idx += 2
        w_ref = refs[idx]; b_ref = refs[idx + 1]; idx += 2
        y_ref = refs[idx]; idx += 1
        if want_stats:
            sum_ref = refs[idx]; sumsq_ref = refs[idx + 1]

        x = x_ref[...]
        if affine_in:
            # Folded BatchNorm (scale/shift precomputed from the previous
            # layer's accumulated stats), fused with the bf16 cast feeding MXU.
            x = (x.astype(jnp.float32) * scale_ref[...]
                 + shift_ref[...]).astype(jnp.bfloat16)

        y = jnp.dot(x, w_ref[...], preferred_element_type=jnp.float32) + b_ref[...]
        if relu_out:
            y = jnp.maximum(y, 0.0)

        if want_stats:
            mi = pl.program_id(0)

            @pl.when(mi == 0)
            def _init():
                sum_ref[...] = jnp.zeros_like(sum_ref)
                sumsq_ref[...] = jnp.zeros_like(sumsq_ref)

            sum_ref[...] += jnp.sum(y, axis=0, keepdims=True)
            sumsq_ref[...] += jnp.sum(y * y, axis=0, keepdims=True)

            if n_extra > 0:
                # Padded batch rows all descend from identical zero input rows,
                # so they are identical; remove their stats contribution with a
                # single [1, d_out] correction on the last tile instead of a
                # full-tile row-mask multiply.
                @pl.when(mi == pl.num_programs(0) - 1)
                def _fix_padding():
                    pad_row = y[tile_m - 1:tile_m, :]
                    sum_ref[...] -= jnp.float32(n_extra) * pad_row
                    sumsq_ref[...] -= jnp.float32(n_extra) * (pad_row * pad_row)

        y_ref[...] = y.astype(y_ref.dtype)

    return kernel


def _fused_layer(x, w, b, scale, shift, *, tile_m, n_real, affine_in, relu_out,
                 want_stats, out_dtype):
    n_pad, d_in = x.shape
    d_out = w.shape[1]
    num_m = n_pad // tile_m
    n_extra = n_pad - n_real

    kernel = _make_layer_kernel(affine_in, relu_out, want_stats, tile_m, n_extra)

    in_specs = [pl.BlockSpec((tile_m, d_in), lambda mi: (mi, 0))]
    args = [x]
    if affine_in:
        const_vec = pl.BlockSpec((1, d_in), lambda mi: (0, 0))
        in_specs += [const_vec, const_vec]
        args += [scale, shift]
    # Constant index_maps -> weights/bias fetched once, resident across tiles.
    in_specs += [pl.BlockSpec((d_in, d_out), lambda mi: (0, 0)),
                 pl.BlockSpec((1, d_out), lambda mi: (0, 0))]
    args += [w, b]

    out_shape = [jax.ShapeDtypeStruct((n_pad, d_out), out_dtype)]
    out_specs = [pl.BlockSpec((tile_m, d_out), lambda mi: (mi, 0))]
    if want_stats:
        stat_spec = pl.BlockSpec((1, d_out), lambda mi: (0, 0))
        out_shape += [jax.ShapeDtypeStruct((1, d_out), jnp.float32)] * 2
        out_specs += [stat_spec, stat_spec]

    # Stats accumulate into a revisited output block across the batch axis, so
    # that axis must be "arbitrary"; stat-free layers are independent per batch
    # tile and marked "parallel" (uses both TensorCores on v7x).
    sem = ("arbitrary",) if want_stats else ("parallel",)
    vmem_limit = _vmem_limit_bytes(tile_m, d_in, d_out, affine_in, want_stats,
                                   jnp.dtype(out_dtype).itemsize)

    return pl.pallas_call(
        kernel,
        grid=(num_m,),
        in_specs=in_specs,
        out_specs=out_specs,
        out_shape=out_shape,
        compiler_params=pltpu.CompilerParams(
            dimension_semantics=sem, vmem_limit_bytes=vmem_limit),
    )(*args)


def init_mlp_params(key, num_layers, in_dim, out_dim, hid_dim, batch_norm=True):
    """Deterministic parameter init mirroring nn.Linear / nn.BatchNorm1d defaults."""
    dims = [in_dim] + [hid_dim] * (num_layers - 1) + [out_dim]
    weights, biases = [], []
    for d_in, d_out in zip(dims[:-1], dims[1:]):
        key, kw, kb = jax.random.split(key, 3)
        bound = 1.0 / jnp.sqrt(d_in)
        weights.append(jax.random.uniform(kw, (d_in, d_out), jnp.float32, -bound, bound))
        biases.append(jax.random.uniform(kb, (1, d_out), jnp.float32, -bound, bound))
    gammas, betas = [], []
    if batch_norm:
        for _ in range(num_layers - 1):
            gammas.append(jnp.ones((1, hid_dim), jnp.float32))
            betas.append(jnp.zeros((1, hid_dim), jnp.float32))
    return {"weights": weights, "biases": biases, "gammas": gammas, "betas": betas}


@functools.partial(jax.jit, static_argnames=("batch_norm",))
def mlp_layer_forward(h, params, batch_norm=True):
    weights, biases = params["weights"], params["biases"]
    num_layers = len(weights)
    n, _ = h.shape
    out_dim = weights[-1].shape[1]
    out_dtype = h.dtype

    lane = _lane_granularity()

    def padf(d):
        p = _round_up(d, 128)
        if lane == 256 and p > 128:
            p = _round_up(p, 256)
        return p

    dpad = [padf(w.shape[0]) for w in weights] + [padf(out_dim)]
    tile_m = _pick_tile_m(n, max(dpad))
    n_pad = _round_up(n, tile_m)

    def pad2(a, rows, cols):
        return jnp.pad(a, ((0, rows - a.shape[0]), (0, cols - a.shape[1])))

    x = pad2(h.astype(jnp.float32), n_pad, dpad[0]).astype(jnp.bfloat16)

    s = sq = None
    for i in range(num_layers):
        last = i == num_layers - 1
        affine_in = batch_norm and i >= 1       # BN of this layer's input
        relu_out = not last                      # producer applies the ReLU
        want_stats = batch_norm and not last     # stats for the next BN

        w = pad2(weights[i], dpad[i], dpad[i + 1]).astype(jnp.bfloat16)
        b = pad2(biases[i], 1, dpad[i + 1]).astype(jnp.float32)

        if affine_in:
            # Phase 2 of the two-phase BN: fold accumulated stats into a single
            # scale/shift (tiny [1, d] math; padded features get scale=shift=0).
            g = pad2(params["gammas"][i - 1], 1, dpad[i]).astype(jnp.float32)
            beta = pad2(params["betas"][i - 1], 1, dpad[i]).astype(jnp.float32)
            mean = s / n
            var = jnp.maximum(sq / n - mean * mean, 0.0)
            scale = g * lax.rsqrt(var + _EPS)
            shift = beta - mean * scale
        else:
            scale = shift = None

        outs = _fused_layer(
            x, w, b, scale, shift, tile_m=tile_m, n_real=n,
            affine_in=affine_in, relu_out=relu_out, want_stats=want_stats,
            out_dtype=out_dtype if last else jnp.bfloat16)

        if want_stats:
            x, s, sq = outs
        else:
            x = outs[0]

    return x[:n, :out_dim]


def _reference_forward(h, params, batch_norm=True, mirror_kernel_precision=True):
    """Pure-JAX reference for the PyTorch forward.  With
    mirror_kernel_precision=True it mirrors the kernel's precision policy
    (bf16 matmuls with f32 accumulation, bf16 inter-layer activations, f32
    batch statistics) so the correctness check stays tight."""
    weights, biases = params["weights"], params["biases"]
    num_layers = len(weights)

    def mm(x, w):
        if mirror_kernel_precision:
            return jnp.dot(x.astype(jnp.bfloat16), w.astype(jnp.bfloat16),
                           preferred_element_type=jnp.float32)
        return jnp.dot(x, w, preferred_element_type=jnp.float32)

    y = mm(h.astype(jnp.float32), weights[0]) + biases[0]
    for i in range(1, num_layers):
        r = jnp.maximum(y, 0.0)
        if batch_norm:
            mu = jnp.mean(r, axis=0, keepdims=True)
            var = jnp.maximum(jnp.mean(r * r, axis=0, keepdims=True) - mu * mu, 0.0)
            scale = params["gammas"][i - 1] * lax.rsqrt(var + _EPS)
            shift = params["betas"][i - 1] - mu * scale
            if mirror_kernel_precision:
                r = r.astype(jnp.bfloat16).astype(jnp.float32)
            x = r * scale + shift
        else:
            x = r
        y = mm(x, weights[i]) + biases[i]
    return y


if __name__ == "__main__":
    num_layers, in_dim, hid_dim, out_dim = 3, 16, 32, 8
    batch = 8

    key = jax.random.PRNGKey(0)
    key, kx, kp = jax.random.split(key, 3)
    h = jax.random.normal(kx, (batch, in_dim), jnp.float32)
    params = init_mlp_params(kp, num_layers, in_dim, out_dim, hid_dim, batch_norm=True)

    out = jax.block_until_ready(mlp_layer_forward(h, params, batch_norm=True))
    assert out.shape == (batch, out_dim)
    ref = _reference_forward(h, params, batch_norm=True)
    assert jnp.allclose(out, ref, atol=1e-2, rtol=1e-2), "BN path mismatch vs reference"

    out_nobn = jax.block_until_ready(mlp_layer_forward(h, params, batch_norm=False))
    ref_nobn = _reference_forward(h, params, batch_norm=False)
    assert jnp.allclose(out_nobn, ref_nobn, atol=1e-2, rtol=1e-2), \
        "no-BN path mismatch vs reference"

    print("KERNEL_OK")
</pallas_src>

<mosaic_0001>
module attributes {stable_mosaic.version = 11 : i64} {
  func.func @kernel(%arg0: i32, %arg1: memref<16x128xbf16, #tpu.memory_space<vmem>>, %arg2: memref<128x128xbf16, #tpu.memory_space<vmem>>, %arg3: memref<1x128xf32, #tpu.memory_space<vmem>>, %arg4: memref<16x128xbf16, #tpu.memory_space<vmem>>, %arg5: memref<1x128xf32, #tpu.memory_space<vmem>>, %arg6: memref<1x128xf32, #tpu.memory_space<vmem>>) attributes {dimension_semantics = [#tpu.dimension_semantics<arbitrary>], iteration_bounds = array<i64: 1>, scalar_prefetch = 0 : i64, scratch_operands = 0 : i64, tpu.core_type = #tpu.core_type<tc>, window_params = [{transform_indices = @transform_0, window_bounds = array<i64: 16, 128>}, {pipeline_mode = #tpu.pipeline_mode<synchronous>, transform_indices = @transform_1, window_bounds = array<i64: 128, 128>}, {pipeline_mode = #tpu.pipeline_mode<synchronous>, transform_indices = @transform_2, window_bounds = array<i64: 1, 128>}, {transform_indices = @transform_3, window_bounds = array<i64: 16, 128>}, {pipeline_mode = #tpu.pipeline_mode<synchronous>, transform_indices = @transform_4, window_bounds = array<i64: 1, 128>}, {pipeline_mode = #tpu.pipeline_mode<synchronous>, transform_indices = @transform_5, window_bounds = array<i64: 1, 128>}]} {
    %c0 = arith.constant 0 : index
    %c0_0 = arith.constant 0 : index
    %0 = vector.load %arg1[%c0, %c0_0] : memref<16x128xbf16, #tpu.memory_space<vmem>>, vector<16x128xbf16>
    %c0_1 = arith.constant 0 : index
    %c0_2 = arith.constant 0 : index
    %1 = vector.load %arg2[%c0_1, %c0_2] : memref<128x128xbf16, #tpu.memory_space<vmem>>, vector<128x128xbf16>
    %cst = arith.constant dense<0.000000e+00> : vector<16x128xf32>
    %2 = tpu.matmul %0, %1, %cst {dimension_numbers = #tpu.dot_dimension_numbers<[1], [0], [0], [1], [0, 0, 1, 1], [], []>} : vector<16x128xbf16>, vector<128x128xbf16>, vector<16x128xf32> -> vector<16x128xf32>
    %c0_3 = arith.constant 0 : index
    %c0_4 = arith.constant 0 : index
    %3 = vector.load %arg3[%c0_3, %c0_4] : memref<1x128xf32, #tpu.memory_space<vmem>>, vector<1x128xf32>
    %4 = vector.broadcast %3 : vector<1x128xf32> to vector<16x128xf32>
    %5 = arith.addf %2, %4 : vector<16x128xf32>
    %cst_5 = arith.constant 0.000000e+00 : f32
    %6 = vector.broadcast %cst_5 : f32 to vector<16x128xf32>
    %7 = arith.maximumf %5, %6 : vector<16x128xf32>
    %c0_i32 = arith.constant 0 : i32
    %8 = arith.cmpi eq, %arg0, %c0_i32 : i32
    %9 = arith.extui %8 : i1 to i32
    %c0_i32_6 = arith.constant 0 : i32
    %10 = arith.cmpi ne, %9, %c0_i32_6 : i32
    scf.if %10 {
      %cst_21 = arith.constant 0.000000e+00 : f32
      %27 = vector.broadcast %cst_21 : f32 to vector<1x128xf32>
      %c0_22 = arith.constant 0 : index
      %c0_23 = arith.constant 0 : index
      %28 = vector.load %arg5[%c0_22, %c0_23] : memref<1x128xf32, #tpu.memory_space<vmem>>, vector<1x128xf32>
      tpu.vector_store %arg5[%c0_22, %c0_23], %27 {strides = array<i32>} : memref<1x128xf32, #tpu.memory_space<vmem>>, vector<1x128xf32>,
      %cst_24 = arith.constant 0.000000e+00 : f32
      %29 = vector.broadcast %cst_24 : f32 to vector<1x128xf32>
      %c0_25 = arith.constant 0 : index
      %c0_26 = arith.constant 0 : index
      %30 = vector.load %arg6[%c0_25, %c0_26] : memref<1x128xf32, #tpu.memory_space<vmem>>, vector<1x128xf32>
      tpu.vector_store %arg6[%c0_25, %c0_26], %29 {strides = array<i32>} : memref<1x128xf32, #tpu.memory_space<vmem>>, vector<1x128xf32>,
    } else {
    }
    %c0_7 = arith.constant 0 : index
    %c0_8 = arith.constant 0 : index
    %11 = vector.load %arg5[%c0_7, %c0_8] : memref<1x128xf32, #tpu.memory_space<vmem>>, vector<1x128xf32>
    %cst_9 = arith.constant dense<0.000000e+00> : vector<128xf32>
    %12 = vector.multi_reduction <add>, %7, %cst_9 [0] : vector<16x128xf32> to vector<128xf32>
    %13 = vector.shape_cast %12 : vector<128xf32> to vector<1x128xf32>
    %14 = arith.addf %11, %13 : vector<1x128xf32>
    %c0_10 = arith.constant 0 : index
    %c0_11 = arith.constant 0 : index
    %15 = vector.load %arg5[%c0_10, %c0_11] : memref<1x128xf32, #tpu.memory_space<vmem>>, vector<1x128xf32>
    tpu.vector_store %arg5[%c0_10, %c0_11], %14 {strides = array<i32>} : memref<1x128xf32, #tpu.memory_space<vmem>>, vector<1x128xf32>,
    %c0_12 = arith.constant 0 : index
    %c0_13 = arith.constant 0 : index
    %16 = vector.load %arg6[%c0_12, %c0_13] : memref<1x128xf32, #tpu.memory_space<vmem>>, vector<1x128xf32>
    %17 = arith.mulf %7, %7 : vector<16x128xf32>
    %cst_14 = arith.constant dense<0.000000e+00> : vector<128xf32>
    %18 = vector.multi_reduction <add>, %17, %cst_14 [0] : vector<16x128xf32> to vector<128xf32>
    %19 = vector.shape_cast %18 : vector<128xf32> to vector<1x128xf32>
    %20 = arith.addf %16, %19 : vector<1x128xf32>
    %c0_15 = arith.constant 0 : index
    %c0_16 = arith.constant 0 : index
    %21 = vector.load %arg6[%c0_15, %c0_16] : memref<1x128xf32, #tpu.memory_space<vmem>>, vector<1x128xf32>
    tpu.vector_store %arg6[%c0_15, %c0_16], %20 {strides = array<i32>} : memref<1x128xf32, #tpu.memory_space<vmem>>, vector<1x128xf32>,
    %c0_i32_17 = arith.constant 0 : i32
    %22 = arith.cmpi eq, %arg0, %c0_i32_17 : i32
    %23 = arith.extui %22 : i1 to i32
    %c0_i32_18 = arith.constant 0 : i32
    %24 = arith.cmpi ne, %23, %c0_i32_18 : i32
    scf.if %24 {
      %27 = vector.extract_strided_slice %7 {offsets = [15, 0], sizes = [1, 128], strides = [1, 1]} : vector<16x128xf32> to vector<1x128xf32>
      %c0_21 = arith.constant 0 : index
      %c0_22 = arith.constant 0 : index
      %28 = vector.load %arg5[%c0_21, %c0_22] : memref<1x128xf32, #tpu.memory_space<vmem>>, vector<1x128xf32>
      %cst_23 = arith.constant 8.000000e+00 : f32
      %29 = vector.broadcast %cst_23 : f32 to vector<1x128xf32>
      %30 = arith.mulf %29, %27 : vector<1x128xf32>
      %31 = arith.subf %28, %30 : vector<1x128xf32>
      %c0_24 = arith.constant 0 : index
      %c0_25 = arith.constant 0 : index
      %32 = vector.load %arg5[%c0_24, %c0_25] : memref<1x128xf32, #tpu.memory_space<vmem>>, vector<1x128xf32>
      tpu.vector_store %arg5[%c0_24, %c0_25], %31 {strides = array<i32>} : memref<1x128xf32, #tpu.memory_space<vmem>>, vector<1x128xf32>,
      %c0_26 = arith.constant 0 : index
      %c0_27 = arith.constant 0 : index
      %33 = vector.load %arg6[%c0_26, %c0_27] : memref<1x128xf32, #tpu.memory_space<vmem>>, vector<1x128xf32>
      %34 = arith.mulf %27, %27 : vector<1x128xf32>
      %cst_28 = arith.constant 8.000000e+00 : f32
      %35 = vector.broadcast %cst_28 : f32 to vector<1x128xf32>
      %36 = arith.mulf %35, %34 : vector<1x128xf32>
      %37 = arith.subf %33, %36 : vector<1x128xf32>
      %c0_29 = arith.constant 0 : index
      %c0_30 = arith.constant 0 : index
      %38 = vector.load %arg6[%c0_29, %c0_30] : memref<1x128xf32, #tpu.memory_space<vmem>>, vector<1x128xf32>
      tpu.vector_store %arg6[%c0_29, %c0_30], %37 {strides = array<i32>} : memref<1x128xf32, #tpu.memory_space<vmem>>, vector<1x128xf32>,
    } else {
    }
    %25 = arith.truncf %7 : vector<16x128xf32> to vector<16x128xbf16>
    %c0_19 = arith.constant 0 : index
    %c0_20 = arith.constant 0 : index
    %26 = vector.load %arg4[%c0_19, %c0_20] : memref<16x128xbf16, #tpu.memory_space<vmem>>, vector<16x128xbf16>
    tpu.vector_store %arg4[%c0_19, %c0_20], %25 {strides = array<i32>} : memref<16x128xbf16, #tpu.memory_space<vmem>>, vector<16x128xbf16>,
    return
  }
  func.func @transform_0(%arg0: i32) -> (i32, i32) {
    %c0_i32 = arith.constant 0 : i32
    %c0_i32_0 = arith.constant 0 : i32
    return %arg0, %c0_i32 : i32, i32
  }
  func.func @transform_1(%arg0: i32) -> (i32, i32) {
    %c0_i32 = arith.constant 0 : i32
    %c0_i32_0 = arith.constant 0 : i32
    %c0_i32_1 = arith.constant 0 : i32
    return %c0_i32, %c0_i32_0 : i32, i32
  }
  func.func @transform_2(%arg0: i32) -> (i32, i32) {
    %c0_i32 = arith.constant 0 : i32
    %c0_i32_0 = arith.constant 0 : i32
    %c0_i32_1 = arith.constant 0 : i32
    return %c0_i32, %c0_i32_0 : i32, i32
  }
  func.func @transform_3(%arg0: i32) -> (i32, i32) {
    %c0_i32 = arith.constant 0 : i32
    %c0_i32_0 = arith.constant 0 : i32
    return %arg0, %c0_i32 : i32, i32
  }
  func.func @transform_4(%arg0: i32) -> (i32, i32) {
    %c0_i32 = arith.constant 0 : i32
    %c0_i32_0 = arith.constant 0 : i32
    %c0_i32_1 = arith.constant 0 : i32
    return %c0_i32, %c0_i32_0 : i32, i32
  }
  func.func @transform_5(%arg0: i32) -> (i32, i32) {
    %c0_i32 = arith.constant 0 : i32
    %c0_i32_0 = arith.constant 0 : i32
    %c0_i32_1 = arith.constant 0 : i32
    return %c0_i32, %c0_i32_0 : i32, i32
  }
}

module attributes {stable_mosaic.version = 11 : i64} {
  func.func @kernel(%arg0: i32, %arg1: memref<16x128xbf16, #tpu.memory_space<vmem>>, %arg2: memref<1x128xf32, #tpu.memory_space<vmem>>, %arg3: memref<1x128xf32, #tpu.memory_space<vmem>>, %arg4: memref<128x128xbf16, #tpu.memory_space<vmem>>, %arg5: memref<1x128xf32, #tpu.memory_space<vmem>>, %arg6: memref<16x128xbf16, #tpu.memory_space<vmem>>, %arg7: memref<1x128xf32, #tpu.memory_space<vmem>>, %arg8: memref<1x128xf32, #tpu.memory_space<vmem>>) attributes {dimension_semantics = [#tpu.dimension_semantics<arbitrary>], iteration_bounds = array<i64: 1>, scalar_prefetch = 0 : i64, scratch_operands = 0 : i64, tpu.core_type = #tpu.core_type<tc>, window_params = [{transform_indices = @transform_0, window_bounds = array<i64: 16, 128>}, {pipeline_mode = #tpu.pipeline_mode<synchronous>, transform_indices = @transform_1, window_bounds = array<i64: 1, 128>}, {pipeline_mode = #tpu.pipeline_mode<synchronous>, transform_indices = @transform_2, window_bounds = array<i64: 1, 128>}, {pipeline_mode = #tpu.pipeline_mode<synchronous>, transform_indices = @transform_3, window_bounds = array<i64: 128, 128>}, {pipeline_mode = #tpu.pipeline_mode<synchronous>, transform_indices = @transform_4, window_bounds = array<i64: 1, 128>}, {transform_indices = @transform_5, window_bounds = array<i64: 16, 128>}, {pipeline_mode = #tpu.pipeline_mode<synchronous>, transform_indices = @transform_6, window_bounds = array<i64: 1, 128>}, {pipeline_mode = #tpu.pipeline_mode<synchronous>, transform_indices = @transform_7, window_bounds = array<i64: 1, 128>}]} {
    %c0 = arith.constant 0 : index
    %c0_0 = arith.constant 0 : index
    %0 = vector.load %arg1[%c0, %c0_0] : memref<16x128xbf16, #tpu.memory_space<vmem>>, vector<16x128xbf16>
    %1 = arith.extf %0 : vector<16x128xbf16> to vector<16x128xf32>
    %c0_1 = arith.constant 0 : index
    %c0_2 = arith.constant 0 : index
    %2 = vector.load %arg2[%c0_1, %c0_2] : memref<1x128xf32, #tpu.memory_space<vmem>>, vector<1x128xf32>
    %3 = vector.broadcast %2 : vector<1x128xf32> to vector<16x128xf32>
    %4 = arith.mulf %1, %3 : vector<16x128xf32>
    %c0_3 = arith.constant 0 : index
    %c0_4 = arith.constant 0 : index
    %5 = vector.load %arg3[%c0_3, %c0_4] : memref<1x128xf32, #tpu.memory_space<vmem>>, vector<1x128xf32>
    %6 = vector.broadcast %5 : vector<1x128xf32> to vector<16x128xf32>
    %7 = arith.addf %4, %6 : vector<16x128xf32>
    %8 = arith.truncf %7 : vector<16x128xf32> to vector<16x128xbf16>
    %c0_5 = arith.constant 0 : index
    %c0_6 = arith.constant 0 : index
    %9 = vector.load %arg4[%c0_5, %c0_6] : memref<128x128xbf16, #tpu.memory_space<vmem>>, vector<128x128xbf16>
    %cst = arith.constant dense<0.000000e+00> : vector<16x128xf32>
    %10 = tpu.matmul %8, %9, %cst {dimension_numbers = #tpu.dot_dimension_numbers<[1], [0], [0], [1], [0, 0, 1, 1], [], []>} : vector<16x128xbf16>, vector<128x128xbf16>, vector<16x128xf32> -> vector<16x128xf32>
    %c0_7 = arith.constant 0 : index
    %c0_8 = arith.constant 0 : index
    %11 = vector.load %arg5[%c0_7, %c0_8] : memref<1x128xf32, #tpu.memory_space<vmem>>, vector<1x128xf32>
    %12 = vector.broadcast %11 : vector<1x128xf32> to vector<16x128xf32>
    %13 = arith.addf %10, %12 : vector<16x128xf32>
    %cst_9 = arith.constant 0.000000e+00 : f32
    %14 = vector.broadcast %cst_9 : f32 to vector<16x128xf32>
    %15 = arith.maximumf %13, %14 : vector<16x128xf32>
    %c0_i32 = arith.constant 0 : i32
    %16 = arith.cmpi eq, %arg0, %c0_i32 : i32
    %17 = arith.extui %16 : i1 to i32
    %c0_i32_10 = arith.constant 0 : i32
    %18 = arith.cmpi ne, %17, %c0_i32_10 : i32
    scf.if %18 {
      %cst_25 = arith.constant 0.000000e+00 : f32
      %35 = vector.broadcast %cst_25 : f32 to vector<1x128xf32>
      %c0_26 = arith.constant 0 : index
      %c0_27 = arith.constant 0 : index
      %36 = vector.load %arg7[%c0_26, %c0_27] : memref<1x128xf32, #tpu.memory_space<vmem>>, vector<1x128xf32>
      tpu.vector_store %arg7[%c0_26, %c0_27], %35 {strides = array<i32>} : memref<1x128xf32, #tpu.memory_space<vmem>>, vector<1x128xf32>,
      %cst_28 = arith.constant 0.000000e+00 : f32
      %37 = vector.broadcast %cst_28 : f32 to vector<1x128xf32>
      %c0_29 = arith.constant 0 : index
      %c0_30 = arith.constant 0 : index
      %38 = vector.load %arg8[%c0_29, %c0_30] : memref<1x128xf32, #tpu.memory_space<vmem>>, vector<1x128xf32>
      tpu.vector_store %arg8[%c0_29, %c0_30], %37 {strides = array<i32>} : memref<1x128xf32, #tpu.memory_space<vmem>>, vector<1x128xf32>,
    } else {
    }
    %c0_11 = arith.constant 0 : index
    %c0_12 = arith.constant 0 : index
    %19 = vector.load %arg7[%c0_11, %c0_12] : memref<1x128xf32, #tpu.memory_space<vmem>>, vector<1x128xf32>
    %cst_13 = arith.constant dense<0.000000e+00> : vector<128xf32>
    %20 = vector.multi_reduction <add>, %15, %cst_13 [0] : vector<16x128xf32> to vector<128xf32>
    %21 = vector.shape_cast %20 : vector<128xf32> to vector<1x128xf32>
    %22 = arith.addf %19, %21 : vector<1x128xf32>
    %c0_14 = arith.constant 0 : index
    %c0_15 = arith.constant 0 : index
    %23 = vector.load %arg7[%c0_14, %c0_15] : memref<1x128xf32, #tpu.memory_space<vmem>>, vector<1x128xf32>
    tpu.vector_store %arg7[%c0_14, %c0_15], %22 {strides = array<i32>} : memref<1x128xf32, #tpu.memory_space<vmem>>, vector<1x128xf32>,
    %c0_16 = arith.constant 0 : index
    %c0_17 = arith.constant 0 : index
    %24 = vector.load %arg8[%c0_16, %c0_17] : memref<1x128xf32, #tpu.memory_space<vmem>>, vector<1x128xf32>
    %25 = arith.mulf %15, %15 : vector<16x128xf32>
    %cst_18 = arith.constant dense<0.000000e+00> : vector<128xf32>
    %26 = vector.multi_reduction <add>, %25, %cst_18 [0] : vector<16x128xf32> to vector<128xf32>
    %27 = vector.shape_cast %26 : vector<128xf32> to vector<1x128xf32>
    %28 = arith.addf %24, %27 : vector<1x128xf32>
    %c0_19 = arith.constant 0 : index
    %c0_20 = arith.constant 0 : index
    %29 = vector.load %arg8[%c0_19, %c0_20] : memref<1x128xf32, #tpu.memory_space<vmem>>, vector<1x128xf32>
    tpu.vector_store %arg8[%c0_19, %c0_20], %28 {strides = array<i32>} : memref<1x128xf32, #tpu.memory_space<vmem>>, vector<1x128xf32>,
    %c0_i32_21 = arith.constant 0 : i32
    %30 = arith.cmpi eq, %arg0, %c0_i32_21 : i32
    %31 = arith.extui %30 : i1 to i32
    %c0_i32_22 = arith.constant 0 : i32
    %32 = arith.cmpi ne, %31, %c0_i32_22 : i32
    scf.if %32 {
      %35 = vector.extract_strided_slice %15 {offsets = [15, 0], sizes = [1, 128], strides = [1, 1]} : vector<16x128xf32> to vector<1x128xf32>
      %c0_25 = arith.constant 0 : index
      %c0_26 = arith.constant 0 : index
      %36 = vector.load %arg7[%c0_25, %c0_26] : memref<1x128xf32, #tpu.memory_space<vmem>>, vector<1x128xf32>
      %cst_27 = arith.constant 8.000000e+00 : f32
      %37 = vector.broadcast %cst_27 : f32 to vector<1x128xf32>
      %38 = arith.mulf %37, %35 : vector<1x128xf32>
      %39 = arith.subf %36, %38 : vector<1x128xf32>
      %c0_28 = arith.constant 0 : index
      %c0_29 = arith.constant 0 : index
      %40 = vector.load %arg7[%c0_28, %c0_29] : memref<1x128xf32, #tpu.memory_space<vmem>>, vector<1x128xf32>
      tpu.vector_store %arg7[%c0_28, %c0_29], %39 {strides = array<i32>} : memref<1x128xf32, #tpu.memory_space<vmem>>, vector<1x128xf32>,
      %c0_30 = arith.constant 0 : index
      %c0_31 = arith.constant 0 : index
      %41 = vector.load %arg8[%c0_30, %c0_31] : memref<1x128xf32, #tpu.memory_space<vmem>>, vector<1x128xf32>
      %42 = arith.mulf %35, %35 : vector<1x128xf32>
      %cst_32 = arith.constant 8.000000e+00 : f32
      %43 = vector.broadcast %cst_32 : f32 to vector<1x128xf32>
      %44 = arith.mulf %43, %42 : vector<1x128xf32>
      %45 = arith.subf %41, %44 : vector<1x128xf32>
      %c0_33 = arith.constant 0 : index
      %c0_34 = arith.constant 0 : index
      %46 = vector.load %arg8[%c0_33, %c0_34] : memref<1x128xf32, #tpu.memory_space<vmem>>, vector<1x128xf32>
      tpu.vector_store %arg8[%c0_33, %c0_34], %45 {strides = array<i32>} : memref<1x128xf32, #tpu.memory_space<vmem>>, vector<1x128xf32>,
    } else {
    }
    %33 = arith.truncf %15 : vector<16x128xf32> to vector<16x128xbf16>
    %c0_23 = arith.constant 0 : index
    %c0_24 = arith.constant 0 : index
    %34 = vector.load %arg6[%c0_23, %c0_24] : memref<16x128xbf16, #tpu.memory_space<vmem>>, vector<16x128xbf16>
    tpu.vector_store %arg6[%c0_23, %c0_24], %33 {strides = array<i32>} : memref<16x128xbf16, #tpu.memory_space<vmem>>, vector<16x128xbf16>,
    return
  }
  func.func @transform_0(%arg0: i32) -> (i32, i32) {
    %c0_i32 = arith.constant 0 : i32
    %c0_i32_0 = arith.constant 0 : i32
    return %arg0, %c0_i32 : i32, i32
  }
  func.func @transform_1(%arg0: i32) -> (i32, i32) {
    %c0_i32 = arith.constant 0 : i32
    %c0_i32_0 = arith.constant 0 : i32
    %c0_i32_1 = arith.constant 0 : i32
    return %c0_i32, %c0_i32_0 : i32, i32
  }
  func.func @transform_2(%arg0: i32) -> (i32, i32) {
    %c0_i32 = arith.constant 0 : i32
    %c0_i32_0 = arith.constant 0 : i32
    %c0_i32_1 = arith.constant 0 : i32
    return %c0_i32, %c0_i32_0 : i32, i32
  }
  func.func @transform_3(%arg0: i32) -> (i32, i32) {
    %c0_i32 = arith.constant 0 : i32
    %c0_i32_0 = arith.constant 0 : i32
    %c0_i32_1 = arith.constant 0 : i32
    return %c0_i32, %c0_i32_0 : i32, i32
  }
  func.func @transform_4(%arg0: i32) -> (i32, i32) {
    %c0_i32 = arith.constant 0 : i32
    %c0_i32_0 = arith.constant 0 : i32
    %c0_i32_1 = arith.constant 0 : i32
    return %c0_i32, %c0_i32_0 : i32, i32
  }
  func.func @transform_5(%arg0: i32) -> (i32, i32) {
    %c0_i32 = arith.constant 0 : i32
    %c0_i32_0 = arith.constant 0 : i32
    return %arg0, %c0_i32 : i32, i32
  }
  func.func @transform_6(%arg0: i32) -> (i32, i32) {
    %c0_i32 = arith.constant 0 : i32
    %c0_i32_0 = arith.constant 0 : i32
    %c0_i32_1 = arith.constant 0 : i32
    return %c0_i32, %c0_i32_0 : i32, i32
  }
  func.func @transform_7(%arg0: i32) -> (i32, i32) {
    %c0_i32 = arith.constant 0 : i32
    %c0_i32_0 = arith.constant 0 : i32
    %c0_i32_1 = arith.constant 0 : i32
    return %c0_i32, %c0_i32_0 : i32, i32
  }
}

module attributes {stable_mosaic.version = 11 : i64} {
  func.func @kernel(%arg0: i32, %arg1: memref<16x128xbf16, #tpu.memory_space<vmem>>, %arg2: memref<1x128xf32, #tpu.memory_space<vmem>>, %arg3: memref<1x128xf32, #tpu.memory_space<vmem>>, %arg4: memref<128x128xbf16, #tpu.memory_space<vmem>>, %arg5: memref<1x128xf32, #tpu.memory_space<vmem>>, %arg6: memref<16x128xf32, #tpu.memory_space<vmem>>) attributes {dimension_semantics = [#tpu.dimension_semantics<parallel>], iteration_bounds = array<i64: 1>, scalar_prefetch = 0 : i64, scratch_operands = 0 : i64, tpu.core_type = #tpu.core_type<tc>, window_params = [{transform_indices = @transform_0, window_bounds = array<i64: 16, 128>}, {pipeline_mode = #tpu.pipeline_mode<synchronous>, transform_indices = @transform_1, window_bounds = array<i64: 1, 128>}, {pipeline_mode = #tpu.pipeline_mode<synchronous>, transform_indices = @transform_2, window_bounds = array<i64: 1, 128>}, {pipeline_mode = #tpu.pipeline_mode<synchronous>, transform_indices = @transform_3, window_bounds = array<i64: 128, 128>}, {pipeline_mode = #tpu.pipeline_mode<synchronous>, transform_indices = @transform_4, window_bounds = array<i64: 1, 128>}, {transform_indices = @transform_5, window_bounds = array<i64: 16, 128>}]} {
    %c0 = arith.constant 0 : index
    %c0_0 = arith.constant 0 : index
    %0 = vector.load %arg1[%c0, %c0_0] : memref<16x128xbf16, #tpu.memory_space<vmem>>, vector<16x128xbf16>
    %1 = arith.extf %0 : vector<16x128xbf16> to vector<16x128xf32>
    %c0_1 = arith.constant 0 : index
    %c0_2 = arith.constant 0 : index
    %2 = vector.load %arg2[%c0_1, %c0_2] : memref<1x128xf32, #tpu.memory_space<vmem>>, vector<1x128xf32>
    %3 = vector.broadcast %2 : vector<1x128xf32> to vector<16x128xf32>
    %4 = arith.mulf %1, %3 : vector<16x128xf32>
    %c0_3 = arith.constant 0 : index
    %c0_4 = arith.constant 0 : index
    %5 = vector.load %arg3[%c0_3, %c0_4] : memref<1x128xf32, #tpu.memory_space<vmem>>, vector<1x128xf32>
    %6 = vector.broadcast %5 : vector<1x128xf32> to vector<16x128xf32>
    %7 = arith.addf %4, %6 : vector<16x128xf32>
    %8 = arith.truncf %7 : vector<16x128xf32> to vector<16x128xbf16>
    %c0_5 = arith.constant 0 : index
    %c0_6 = arith.constant 0 : index
    %9 = vector.load %arg4[%c0_5, %c0_6] : memref<128x128xbf16, #tpu.memory_space<vmem>>, vector<128x128xbf16>
    %cst = arith.constant dense<0.000000e+00> : vector<16x128xf32>
    %10 = tpu.matmul %8, %9, %cst {dimension_numbers = #tpu.dot_dimension_numbers<[1], [0], [0], [1], [0, 0, 1, 1], [], []>} : vector<16x128xbf16>, vector<128x128xbf16>, vector<16x128xf32> -> vector<16x128xf32>
    %c0_7 = arith.constant 0 : index
    %c0_8 = arith.constant 0 : index
    %11 = vector.load %arg5[%c0_7, %c0_8] : memref<1x128xf32, #tpu.memory_space<vmem>>, vector<1x128xf32>
    %12 = vector.broadcast %11 : vector<1x128xf32> to vector<16x128xf32>
    %13 = arith.addf %10, %12 : vector<16x128xf32>
    %c0_9 = arith.constant 0 : index
    %c0_10 = arith.constant 0 : index
    %14 = vector.load %arg6[%c0_9, %c0_10] : memref<16x128xf32, #tpu.memory_space<vmem>>, vector<16x128xf32>
    tpu.vector_store %arg6[%c0_9, %c0_10], %13 {strides = array<i32>} : memref<16x128xf32, #tpu.memory_space<vmem>>, vector<16x128xf32>,
    return
  }
  func.func @transform_0(%arg0: i32) -> (i32, i32) {
    %c0_i32 = arith.constant 0 : i32
    %c0_i32_0 = arith.constant 0 : i32
    return %arg0, %c0_i32 : i32, i32
  }
  func.func @transform_1(%arg0: i32) -> (i32, i32) {
    %c0_i32 = arith.constant 0 : i32
    %c0_i32_0 = arith.constant 0 : i32
    %c0_i32_1 = arith.constant 0 : i32
    return %c0_i32, %c0_i32_0 : i32, i32
  }
  func.func @transform_2(%arg0: i32) -> (i32, i32) {
    %c0_i32 = arith.constant 0 : i32
    %c0_i32_0 = arith.constant 0 : i32
    %c0_i32_1 = arith.constant 0 : i32
    return %c0_i32, %c0_i32_0 : i32, i32
  }
  func.func @transform_3(%arg0: i32) -> (i32, i32) {
    %c0_i32 = arith.constant 0 : i32
    %c0_i32_0 = arith.constant 0 : i32
    %c0_i32_1 = arith.constant 0 : i32
    return %c0_i32, %c0_i32_0 : i32, i32
  }
  func.func @transform_4(%arg0: i32) -> (i32, i32) {
    %c0_i32 = arith.constant 0 : i32
    %c0_i32_0 = arith.constant 0 : i32
    %c0_i32_1 = arith.constant 0 : i32
    return %c0_i32, %c0_i32_0 : i32, i32
  }
  func.func @transform_5(%arg0: i32) -> (i32, i32) {
    %c0_i32 = arith.constant 0 : i32
    %c0_i32_0 = arith.constant 0 : i32
    return %arg0, %c0_i32 : i32, i32
  }
}

</mosaic_0001>

<llo_original>
// kernel: mlp_layer_forward.3
$region0: #{mlp_layer_forward.3}
  #allocation0 [shape = 'u32[]', space=smem, size = 0x4, offset = 0x4, fixed_abs, tag = 'smem constant byte address 0x4 - core index']
  #allocation1 [shape = 'u32[144,128]{1,0:T(1,128)}', space=vmem, size = 0x12000, scoped, tag = 'internal scratch']
  %s0 = inlined_call_operand.vmem [shape: bf16[16,128], index: 0, kind: input, shape index: {}]
  %s1 = inlined_call_operand.vmem [shape: bf16[128,128], index: 1, kind: input, shape index: {}]
  %s2 = inlined_call_operand.vmem [shape: f32[1,128], index: 2, kind: input, shape index: {}]
  %s3 = inlined_call_operand.vmem [shape: bf16[16,128], index: 3, kind: output, shape index: {0}]
  %s4 = inlined_call_operand.vmem [shape: f32[1,128], index: 4, kind: output, shape index: {1}]
  %s5 = inlined_call_operand.vmem [shape: f32[1,128], index: 5, kind: output, shape index: {2}]
  %6 = xla_tuple %s3, %s4, %s5
  %s7 = sld [smem:[#allocation0]]
  $region46: #{mlp_layer_forward.3} parent=0
    _
  %s9 = ssub.s32 1, %s7
  %s10 = scalar_select 0, %s9, %s7
  // Predicated region
  $region2: #{mlp_layer_forward.3} parent=0 // pred_check
    _
  $region3: #{mlp_layer_forward.3} parent=0 // pred_check_branch
    %12 = sbr.rel (0) target = $region5
  $region4: #{mlp_layer_forward.3} parent=0 // pred_region
    _
  $region5: #{mlp_layer_forward.3} parent=0 // pred_fallthru
    _
  // Predicated region
  $region6: #{mlp_layer_forward.3} parent=0 // pred_check
    _
  $region7: #{mlp_layer_forward.3} parent=0 // pred_check_branch
    %14 = sbr.rel (0) target = $region9
  $region8: #{mlp_layer_forward.3} parent=0 // pred_region
    _
  $region9: #{mlp_layer_forward.3} parent=0 // pred_fallthru
    _
  // Predicated region
  $region10: #{mlp_layer_forward.3} parent=0 // pred_check
    _
  $region11: #{mlp_layer_forward.3} parent=0 // pred_check_branch
    %16 = sbr.rel (0) target = $region13
  $region12: #{mlp_layer_forward.3} parent=0 // pred_region
    _
  $region13: #{mlp_layer_forward.3} parent=0 // pred_fallthru
    _
  %v18 = vld [vmem:[%s0] sm:$0xf]
  %v19 = vld [vmem:[%s0 + $0x4] sm:$0xf]
  %v20 = vld [vmem:[%s1] sm:$0xf]
  %v21 = vld [vmem:[%s1 + $0x4] sm:$0xf]
  %v22 = vld [vmem:[%s1 + $0x8] sm:$0xf]
  %v23 = vld [vmem:[%s1 + $0xc] sm:$0xf]
  %v24 = vld [vmem:[%s1 + $0x10] sm:$0xf]
  %v25 = vld [vmem:[%s1 + $0x14] sm:$0xf]
  %v26 = vld [vmem:[%s1 + $0x18] sm:$0xf]
  %v27 = vld [vmem:[%s1 + $0x1c] sm:$0xf]
  %v28 = vld [vmem:[%s1 + $0x20] sm:$0xf]
  %v29 = vld [vmem:[%s1 + $0x24] sm:$0xf]
  %v30 = vld [vmem:[%s1 + $0x28] sm:$0xf]
  %v31 = vld [vmem:[%s1 + $0x2c] sm:$0xf]
  %v32 = vld [vmem:[%s1 + $0x30] sm:$0xf]
  %v33 = vld [vmem:[%s1 + $0x34] sm:$0xf]
  %v34 = vld [vmem:[%s1 + $0x38] sm:$0xf]
  %v35 = vld [vmem:[%s1 + $0x3c] sm:$0xf]
  %v36 = vld [vmem:[%s2] sm:$0x1]
  %v38 = vlaneseq
  %v39 = vshrl.u32 %v38, 7
  %v40 = vsub.s32 0, %v39
  %v41 = vrot.slane %v36, %v40
  %v45 = vunpack.c.l.b16 %v18
  %v46 = vunpack.c.l.b16 %v19
  %v47 = vpack.c.b16 %v46, %v45
  %v65 = vunpack.c.l.b16 %v20
  %v66 = vunpack.c.l.b16 %v21
  %v67 = vunpack.c.l.b16 %v22
  %v68 = vunpack.c.l.b16 %v23
  %v69 = vunpack.c.l.b16 %v24
  %v70 = vunpack.c.l.b16 %v25
  %v71 = vunpack.c.l.b16 %v26
  %v72 = vunpack.c.l.b16 %v27
  %v73 = vunpack.c.l.b16 %v28
  %v74 = vunpack.c.l.b16 %v29
  %v75 = vunpack.c.l.b16 %v30
  %v76 = vunpack.c.l.b16 %v31
  %v77 = vunpack.c.l.b16 %v32
  %v78 = vunpack.c.l.b16 %v33
  %v79 = vunpack.c.l.b16 %v34
  %v80 = vunpack.c.l.b16 %v35
  %v81 = vpack.c.b16 %v66, %v65
  %v82 = vpack.c.b16 %v68, %v67
  %v83 = vpack.c.b16 %v70, %v69
  %v84 = vpack.c.b16 %v72, %v71
  %v85 = vpack.c.b16 %v74, %v73
  %v86 = vpack.c.b16 %v76, %v75
  %v87 = vpack.c.b16 %v78, %v77
  %v88 = vpack.c.b16 %v80, %v79
  %97 = vmatprep.subr.bf16.mxu0 0
  %98 = vmatpush1.bf16.msra.mxu0 %v81
  %99 = vmatprep.subr.bf16.mxu0 0
  %100 = vmatpush1.bf16.msra.mxu0 %v82
  %101 = vmatprep.subr.bf16.mxu0 0
  %102 = vmatpush1.bf16.msra.mxu0 %v83
  %103 = vmatprep.subr.bf16.mxu0 0
  %104 = vmatpush1.bf16.msra.mxu0 %v84
  %105 = vmatprep.subr.bf16.mxu0 0
  %106 = vmatpush1.bf16.msra.mxu0 %v85
  %107 = vmatprep.subr.bf16.mxu0 0
  %108 = vmatpush1.bf16.msra.mxu0 %v86
  %109 = vmatprep.subr.bf16.mxu0 0
  %110 = vmatpush1.bf16.msra.mxu0 %v87
  %111 = vmatprep.subr.bf16.mxu0 0
  %112 = vmatpush1.bf16.msra.mxu0 %v88
  %113 = vmatprep.subr.bf16.mxu0 0
  %114 = vmatpush1.bf16.msra.mxu0 0
  %115 = vmatprep.subr.bf16.mxu0 0
  %116 = vmatpush1.bf16.msra.mxu0 0
  %117 = vmatprep.subr.bf16.mxu0 0
  %118 = vmatpush1.bf16.msra.mxu0 0
  %119 = vmatprep.subr.bf16.mxu0 0
  %120 = vmatpush1.bf16.msra.mxu0 0
  %121 = vmatprep.subr.bf16.mxu0 0
  %122 = vmatpush1.bf16.msra.mxu0 0
  %123 = vmatprep.subr.bf16.mxu0 0
  %124 = vmatpush1.bf16.msra.mxu0 0
  %125 = vmatprep.subr.bf16.mxu0 0
  %126 = vmatpush1.bf16.msra.mxu0 0
  %127 = vmatprep.subr.bf16.mxu0 0
  %128 = vmatpush1.bf16.msra.mxu0 0
  %129 = vmatprep.mubr.bf16.mxu0 0
  %130 = vmatmul.mubr.bf16.gmra.mrb[0].mxu0 %v47
  %v131 = vpop.f32.mrb[0].mxu0
  %v132 = vadd.f32 %v41, %v131
  %v133 = vpop.f32.mrb[0].mxu0
  %v134 = vpop.f32.mrb[0].mxu0
  %v135 = vadd.f32 %v41, %v134
  %v136 = vpop.f32.mrb[0].mxu0
  %137 = vdwg.mxu0
  %v138 = vmax.f32 %v132, 0.0
  %v139 = vmax.f32 %v135, 0.0
  %p140 = scmp.eq.s32.totalorder 0, 0
  // Predicated region
  $region14: #{mlp_layer_forward.3} parent=0 // pred_check
    %p141 = pneg %p140
  $region15: #{mlp_layer_forward.3} parent=0 // pred_check_branch
    %143 = sbr.rel (%p141) target = $region17
  $region16: #{mlp_layer_forward.3} parent=0 // pred_region
    %144 = vst [vmem:[%s4] sm:$0x1] 0.0
    %145 = vst [vmem:[%s5] sm:$0x1] 0.0
  $region17: #{mlp_layer_forward.3} parent=0 // pred_fallthru
    _
  %v146 = vld [vmem:[%s4] sm:$0x1]
  %v147 = vadd.f32 %v138, %v139
  %v148 = vrot.slane %v147, 4
  %v149 = vadd.f32 %v147, %v148
  %v150 = vrot.slane %v149, 2
  %v151 = vadd.f32 %v149, %v150
  %v152 = vrot.slane %v151, 1
  %v153 = vadd.f32 %v151, %v152
  %v154 = vadd.f32 %v146, %v153
  %155 = vst [vmem:[%s4] sm:$0x1] %v154
  %v156 = vld [vmem:[%s5] sm:$0x1]
  %v157 = vmul.f32 %v138, %v138
  %v158 = vmul.f32 %v139, %v139
  %v159 = vadd.f32 %v157, %v158
  %v160 = vrot.slane %v159, 4
  %v161 = vadd.f32 %v159, %v160
  %v162 = vrot.slane %v161, 2
  %v163 = vadd.f32 %v161, %v162
  %v164 = vrot.slane %v163, 1
  %v165 = vadd.f32 %v163, %v164
  %v166 = vadd.f32 %v156, %v165
  %167 = vst [vmem:[%s5] sm:$0x1] %v166
  // Predicated region
  $region18: #{mlp_layer_forward.3} parent=0 // pred_check
    %p168 = pneg %p140
  $region19: #{mlp_layer_forward.3} parent=0 // pred_check_branch
    %170 = sbr.rel (%p168) target = $region21
  $region20: #{mlp_layer_forward.3} parent=0 // pred_region
    %v171 = vld [vmem:[%s4] sm:$0x1]
    %v172 = vmul.f32 %v139, 8.0
    %v174 = vcombine.high %v172, %v172
    %v176 = vunpack.c.l.s4 1966171168
    %v177 = vunpack.c.0.s8 %v176
    %v178 = vlaneseq
    %v179 = vshrl.u32 %v178, 7
    %v180 = vsub.s32 %v177, %v179
    %v181 = vrot.slane %v174, %v180
    %v182 = vcombine.high %v181, %v181
    %v184 = vunpack.c.l.s4 1966171168
    %v185 = vunpack.c.0.s8 %v184
    %v186 = vlaneseq
    %v187 = vshrl.u32 %v186, 7
    %v188 = vsub.s32 %v185, %v187
    %v189 = vrot.slane %v182, %v188
    %v190 = vcombine.high %v189, %v189
    %v192 = vsub.f32 %v171, %v190
    %193 = vst [vmem:[%s4] sm:$0x1] %v192
    %v194 = vld [vmem:[%s5] sm:$0x1]
    %v195 = vmul.f32 %v158, 8.0
    %v197 = vcombine.high %v195, %v195
    %v199 = vunpack.c.l.s4 1966171168
    %v200 = vunpack.c.0.s8 %v199
    %v201 = vlaneseq
    %v202 = vshrl.u32 %v201, 7
    %v203 = vsub.s32 %v200, %v202
    %v204 = vrot.slane %v197, %v203
    %v205 = vcombine.high %v204, %v204
    %v207 = vunpack.c.l.s4 1966171168
    %v208 = vunpack.c.0.s8 %v207
    %v209 = vlaneseq
    %v210 = vshrl.u32 %v209, 7
    %v211 = vsub.s32 %v208, %v210
    %v212 = vrot.slane %v205, %v211
    %v213 = vcombine.high %v212, %v212
    %v215 = vsub.f32 %v194, %v213
    %216 = vst [vmem:[%s5] sm:$0x1] %v215
  $region21: #{mlp_layer_forward.3} parent=0 // pred_fallthru
    _
  %v217 = vpack.c.bf16 %v139, %v138
  %v219 = vunpack.c.l.b16 %v217
  %v220 = vunpack.c.h.b16 %v217
  %v221 = vpack.c.b16 %v219, %v219
  %v222 = vpack.c.b16 %v220, %v220
  %225 = vst [vmem:[%s3] sm:$0xf] %v221
  %226 = vst [vmem:[%s3 + $0x4] sm:$0xf] %v222
  // Predicated region
  $region22: #{mlp_layer_forward.3} parent=0 // pred_check
    _
  $region23: #{mlp_layer_forward.3} parent=0 // pred_check_branch
    %228 = sbr.rel (0) target = $region25
  $region24: #{mlp_layer_forward.3} parent=0 // pred_region
    _
  $region25: #{mlp_layer_forward.3} parent=0 // pred_fallthru
    _
  // Predicated region
  $region26: #{mlp_layer_forward.3} parent=0 // pred_check
    _
  $region27: #{mlp_layer_forward.3} parent=0 // pred_check_branch
    %230 = sbr.rel (0) target = $region29
  $region28: #{mlp_layer_forward.3} parent=0 // pred_region
    _
  $region29: #{mlp_layer_forward.3} parent=0 // pred_fallthru
    _
  // Predicated region
  $region30: #{mlp_layer_forward.3} parent=0 // pred_check
    _
  $region31: #{mlp_layer_forward.3} parent=0 // pred_check_branch
    %232 = sbr.rel (0) target = $region33
  $region32: #{mlp_layer_forward.3} parent=0 // pred_region
    _
  $region33: #{mlp_layer_forward.3} parent=0 // pred_fallthru
    _
  // Predicated region
  $region34: #{mlp_layer_forward.3} parent=0 // pred_check
    _
  $region35: #{mlp_layer_forward.3} parent=0 // pred_check_branch
    %234 = sbr.rel (0) target = $region37
  $region36: #{mlp_layer_forward.3} parent=0 // pred_region
    _
  $region37: #{mlp_layer_forward.3} parent=0 // pred_fallthru
    _
  // Predicated region
  $region38: #{mlp_layer_forward.3} parent=0 // pred_check
    _
  $region39: #{mlp_layer_forward.3} parent=0 // pred_check_branch
    %236 = sbr.rel (0) target = $region41
  $region40: #{mlp_layer_forward.3} parent=0 // pred_region
    _
  $region41: #{mlp_layer_forward.3} parent=0 // pred_fallthru
    _
  // Predicated region
  $region42: #{mlp_layer_forward.3} parent=0 // pred_check
    _
  $region43: #{mlp_layer_forward.3} parent=0 // pred_check_branch
    %238 = sbr.rel (0) target = $region45
  $region44: #{mlp_layer_forward.3} parent=0 // pred_region
    _
  $region45: #{mlp_layer_forward.3} parent=0 // pred_fallthru
    _

// kernel: mlp_layer_forward.4
$region0: #{mlp_layer_forward.4}
  #allocation0 [shape = 'u32[]', space=smem, size = 0x4, offset = 0x4, fixed_abs, tag = 'smem constant byte address 0x4 - core index']
  #allocation1 [shape = 'u32[144,128]{1,0:T(1,128)}', space=vmem, size = 0x12000, scoped, tag = 'internal scratch']
  %s0 = inlined_call_operand.vmem [shape: bf16[16,128], index: 0, kind: input, shape index: {}]
  %s1 = inlined_call_operand.vmem [shape: f32[1,128], index: 1, kind: input, shape index: {}]
  %s2 = inlined_call_operand.vmem [shape: f32[1,128], index: 2, kind: input, shape index: {}]
  %s3 = inlined_call_operand.vmem [shape: bf16[128,128], index: 3, kind: input, shape index: {}]
  %s4 = inlined_call_operand.vmem [shape: f32[1,128], index: 4, kind: input, shape index: {}]
  %s5 = inlined_call_operand.vmem [shape: bf16[16,128], index: 5, kind: output, shape index: {0}]
  %s6 = inlined_call_operand.vmem [shape: f32[1,128], index: 6, kind: output, shape index: {1}]
  %s7 = inlined_call_operand.vmem [shape: f32[1,128], index: 7, kind: output, shape index: {2}]
  %8 = xla_tuple %s5, %s6, %s7
  %s9 = sld [smem:[#allocation0]]
  $region54: #{mlp_layer_forward.4} parent=0
    _
  %s11 = ssub.s32 1, %s9
  %s12 = scalar_select 0, %s11, %s9
  // Predicated region
  $region2: #{mlp_layer_forward.4} parent=0 // pred_check
    _
  $region3: #{mlp_layer_forward.4} parent=0 // pred_check_branch
    %14 = sbr.rel (0) target = $region5
  $region4: #{mlp_layer_forward.4} parent=0 // pred_region
    _
  $region5: #{mlp_layer_forward.4} parent=0 // pred_fallthru
    _
  // Predicated region
  $region6: #{mlp_layer_forward.4} parent=0 // pred_check
    _
  $region7: #{mlp_layer_forward.4} parent=0 // pred_check_branch
    %16 = sbr.rel (0) target = $region9
  $region8: #{mlp_layer_forward.4} parent=0 // pred_region
    _
  $region9: #{mlp_layer_forward.4} parent=0 // pred_fallthru
    _
  // Predicated region
  $region10: #{mlp_layer_forward.4} parent=0 // pred_check
    _
  $region11: #{mlp_layer_forward.4} parent=0 // pred_check_branch
    %18 = sbr.rel (0) target = $region13
  $region12: #{mlp_layer_forward.4} parent=0 // pred_region
    _
  $region13: #{mlp_layer_forward.4} parent=0 // pred_fallthru
    _
  // Predicated region
  $region14: #{mlp_layer_forward.4} parent=0 // pred_check
    _
  $region15: #{mlp_layer_forward.4} parent=0 // pred_check_branch
    %20 = sbr.rel (0) target = $region17
  $region16: #{mlp_layer_forward.4} parent=0 // pred_region
    _
  $region17: #{mlp_layer_forward.4} parent=0 // pred_fallthru
    _
  // Predicated region
  $region18: #{mlp_layer_forward.4} parent=0 // pred_check
    _
  $region19: #{mlp_layer_forward.4} parent=0 // pred_check_branch
    %22 = sbr.rel (0) target = $region21
  $region20: #{mlp_layer_forward.4} parent=0 // pred_region
    _
  $region21: #{mlp_layer_forward.4} parent=0 // pred_fallthru
    _
  %v24 = vld [vmem:[%s0] sm:$0xf]
  %v25 = vld [vmem:[%s0 + $0x4] sm:$0xf]
  %v26 = vunpack.c.l.bf16 %v24
  %v27 = vunpack.c.l.bf16 %v25
  %v28 = vld [vmem:[%s1] sm:$0x1]
  %v30 = vlaneseq
  %v31 = vshrl.u32 %v30, 7
  %v32 = vsub.s32 0, %v31
  %v33 = vrot.slane %v28, %v32
  %v35 = vmul.f32 %v26, %v33
  %v36 = vmul.f32 %v27, %v33
  %v37 = vld [vmem:[%s2] sm:$0x1]
  %v39 = vlaneseq
  %v40 = vshrl.u32 %v39, 7
  %v41 = vsub.s32 0, %v40
  %v42 = vrot.slane %v37, %v41
  %v44 = vadd.f32 %v35, %v42
  %v45 = vadd.f32 %v36, %v42
  %v46 = vpack.c.bf16 %v45, %v44
  %v47 = vld [vmem:[%s3] sm:$0xf]
  %v48 = vld [vmem:[%s3 + $0x4] sm:$0xf]
  %v49 = vld [vmem:[%s3 + $0x8] sm:$0xf]
  %v50 = vld [vmem:[%s3 + $0xc] sm:$0xf]
  %v51 = vld [vmem:[%s3 + $0x10] sm:$0xf]
  %v52 = vld [vmem:[%s3 + $0x14] sm:$0xf]
  %v53 = vld [vmem:[%s3 + $0x18] sm:$0xf]
  %v54 = vld [vmem:[%s3 + $0x1c] sm:$0xf]
  %v55 = vld [vmem:[%s3 + $0x20] sm:$0xf]
  %v56 = vld [vmem:[%s3 + $0x24] sm:$0xf]
  %v57 = vld [vmem:[%s3 + $0x28] sm:$0xf]
  %v58 = vld [vmem:[%s3 + $0x2c] sm:$0xf]
  %v59 = vld [vmem:[%s3 + $0x30] sm:$0xf]
  %v60 = vld [vmem:[%s3 + $0x34] sm:$0xf]
  %v61 = vld [vmem:[%s3 + $0x38] sm:$0xf]
  %v62 = vld [vmem:[%s3 + $0x3c] sm:$0xf]
  %v63 = vld [vmem:[%s4] sm:$0x1]
  %v65 = vlaneseq
  %v66 = vshrl.u32 %v65, 7
  %v67 = vsub.s32 0, %v66
  %v68 = vrot.slane %v63, %v67
  %v86 = vunpack.c.l.b16 %v47
  %v87 = vunpack.c.l.b16 %v48
  %v88 = vunpack.c.l.b16 %v49
  %v89 = vunpack.c.l.b16 %v50
  %v90 = vunpack.c.l.b16 %v51
  %v91 = vunpack.c.l.b16 %v52
  %v92 = vunpack.c.l.b16 %v53
  %v93 = vunpack.c.l.b16 %v54
  %v94 = vunpack.c.l.b16 %v55
  %v95 = vunpack.c.l.b16 %v56
  %v96 = vunpack.c.l.b16 %v57
  %v97 = vunpack.c.l.b16 %v58
  %v98 = vunpack.c.l.b16 %v59
  %v99 = vunpack.c.l.b16 %v60
  %v100 = vunpack.c.l.b16 %v61
  %v101 = vunpack.c.l.b16 %v62
  %v102 = vpack.c.b16 %v87, %v86
  %v103 = vpack.c.b16 %v89, %v88
  %v104 = vpack.c.b16 %v91, %v90
  %v105 = vpack.c.b16 %v93, %v92
  %v106 = vpack.c.b16 %v95, %v94
  %v107 = vpack.c.b16 %v97, %v96
  %v108 = vpack.c.b16 %v99, %v98
  %v109 = vpack.c.b16 %v101, %v100
  %118 = vmatprep.subr.bf16.mxu0 0
  %119 = vmatpush1.bf16.msra.mxu0 %v102
  %120 = vmatprep.subr.bf16.mxu0 0
  %121 = vmatpush1.bf16.msra.mxu0 %v103
  %122 = vmatprep.subr.bf16.mxu0 0
  %123 = vmatpush1.bf16.msra.mxu0 %v104
  %124 = vmatprep.subr.bf16.mxu0 0
  %125 = vmatpush1.bf16.msra.mxu0 %v105
  %126 = vmatprep.subr.bf16.mxu0 0
  %127 = vmatpush1.bf16.msra.mxu0 %v106
  %128 = vmatprep.subr.bf16.mxu0 0
  %129 = vmatpush1.bf16.msra.mxu0 %v107
  %130 = vmatprep.subr.bf16.mxu0 0
  %131 = vmatpush1.bf16.msra.mxu0 %v108
  %132 = vmatprep.subr.bf16.mxu0 0
  %133 = vmatpush1.bf16.msra.mxu0 %v109
  %134 = vmatprep.subr.bf16.mxu0 0
  %135 = vmatpush1.bf16.msra.mxu0 0
  %136 = vmatprep.subr.bf16.mxu0 0
  %137 = vmatpush1.bf16.msra.mxu0 0
  %138 = vmatprep.subr.bf16.mxu0 0
  %139 = vmatpush1.bf16.msra.mxu0 0
  %140 = vmatprep.subr.bf16.mxu0 0
  %141 = vmatpush1.bf16.msra.mxu0 0
  %142 = vmatprep.subr.bf16.mxu0 0
  %143 = vmatpush1.bf16.msra.mxu0 0
  %144 = vmatprep.subr.bf16.mxu0 0
  %145 = vmatpush1.bf16.msra.mxu0 0
  %146 = vmatprep.subr.bf16.mxu0 0
  %147 = vmatpush1.bf16.msra.mxu0 0
  %148 = vmatprep.subr.bf16.mxu0 0
  %149 = vmatpush1.bf16.msra.mxu0 0
  %150 = vmatprep.mubr.bf16.mxu0 0
  %151 = vmatmul.mubr.bf16.gmra.mrb[0].mxu0 %v46
  %v152 = vpop.f32.mrb[0].mxu0
  %v153 = vadd.f32 %v68, %v152
  %v154 = vpop.f32.mrb[0].mxu0
  %v155 = vpop.f32.mrb[0].mxu0
  %v156 = vadd.f32 %v68, %v155
  %v157 = vpop.f32.mrb[0].mxu0
  %158 = vdwg.mxu0
  %v159 = vmax.f32 %v153, 0.0
  %v160 = vmax.f32 %v156, 0.0
  %p161 = scmp.eq.s32.totalorder 0, 0
  // Predicated region
  $region22: #{mlp_layer_forward.4} parent=0 // pred_check
    %p162 = pneg %p161
  $region23: #{mlp_layer_forward.4} parent=0 // pred_check_branch
    %164 = sbr.rel (%p162) target = $region25
  $region24: #{mlp_layer_forward.4} parent=0 // pred_region
    %165 = vst [vmem:[%s6] sm:$0x1] 0.0
    %166 = vst [vmem:[%s7] sm:$0x1] 0.0
  $region25: #{mlp_layer_forward.4} parent=0 // pred_fallthru
    _
  %v167 = vld [vmem:[%s6] sm:$0x1]
  %v168 = vadd.f32 %v159, %v160
  %v169 = vrot.slane %v168, 4
  %v170 = vadd.f32 %v168, %v169
  %v171 = vrot.slane %v170, 2
  %v172 = vadd.f32 %v170, %v171
  %v173 = vrot.slane %v172, 1
  %v174 = vadd.f32 %v172, %v173
  %v175 = vadd.f32 %v167, %v174
  %176 = vst [vmem:[%s6] sm:$0x1] %v175
  %v177 = vld [vmem:[%s7] sm:$0x1]
  %v178 = vmul.f32 %v159, %v159
  %v179 = vmul.f32 %v160, %v160
  %v180 = vadd.f32 %v178, %v179
  %v181 = vrot.slane %v180, 4
  %v182 = vadd.f32 %v180, %v181
  %v183 = vrot.slane %v182, 2
  %v184 = vadd.f32 %v182, %v183
  %v185 = vrot.slane %v184, 1
  %v186 = vadd.f32 %v184, %v185
  %v187 = vadd.f32 %v177, %v186
  %188 = vst [vmem:[%s7] sm:$0x1] %v187
  // Predicated region
  $region26: #{mlp_layer_forward.4} parent=0 // pred_check
    %p189 = pneg %p161
  $region27: #{mlp_layer_forward.4} parent=0 // pred_check_branch
    %191 = sbr.rel (%p189) target = $region29
  $region28: #{mlp_layer_forward.4} parent=0 // pred_region
    %v192 = vld [vmem:[%s6] sm:$0x1]
    %v193 = vmul.f32 %v160, 8.0
    %v195 = vcombine.high %v193, %v193
    %v197 = vunpack.c.l.s4 1966171168
    %v198 = vunpack.c.0.s8 %v197
    %v199 = vlaneseq
    %v200 = vshrl.u32 %v199, 7
    %v201 = vsub.s32 %v198, %v200
    %v202 = vrot.slane %v195, %v201
    %v203 = vcombine.high %v202, %v202
    %v205 = vunpack.c.l.s4 1966171168
    %v206 = vunpack.c.0.s8 %v205
    %v207 = vlaneseq
    %v208 = vshrl.u32 %v207, 7
    %v209 = vsub.s32 %v206, %v208
    %v210 = vrot.slane %v203, %v209
    %v211 = vcombine.high %v210, %v210
    %v213 = vsub.f32 %v192, %v211
    %214 = vst [vmem:[%s6] sm:$0x1] %v213
    %v215 = vld [vmem:[%s7] sm:$0x1]
    %v216 = vmul.f32 %v179, 8.0
    %v218 = vcombine.high %v216, %v216
    %v220 = vunpack.c.l.s4 1966171168
    %v221 = vunpack.c.0.s8 %v220
    %v222 = vlaneseq
    %v223 = vshrl.u32 %v222, 7
    %v224 = vsub.s32 %v221, %v223
    %v225 = vrot.slane %v218, %v224
    %v226 = vcombine.high %v225, %v225
    %v228 = vunpack.c.l.s4 1966171168
    %v229 = vunpack.c.0.s8 %v228
    %v230 = vlaneseq
    %v231 = vshrl.u32 %v230, 7
    %v232 = vsub.s32 %v229, %v231
    %v233 = vrot.slane %v226, %v232
    %v234 = vcombine.high %v233, %v233
    %v236 = vsub.f32 %v215, %v234
    %237 = vst [vmem:[%s7] sm:$0x1] %v236
  $region29: #{mlp_layer_forward.4} parent=0 // pred_fallthru
    _
  %v238 = vpack.c.bf16 %v160, %v159
  %v240 = vunpack.c.l.b16 %v238
  %v241 = vunpack.c.h.b16 %v238
  %v242 = vpack.c.b16 %v240, %v240
  %v243 = vpack.c.b16 %v241, %v241
  %246 = vst [vmem:[%s5] sm:$0xf] %v242
  %247 = vst [vmem:[%s5 + $0x4] sm:$0xf] %v243
  // Predicated region
  $region30: #{mlp_layer_forward.4} parent=0 // pred_check
    _
  $region31: #{mlp_layer_forward.4} parent=0 // pred_check_branch
    %249 = sbr.rel (0) target = $region33
  $region32: #{mlp_layer_forward.4} parent=0 // pred_region
    _
  $region33: #{mlp_layer_forward.4} parent=0 // pred_fallthru
    _
  // Predicated region
  $region34: #{mlp_layer_forward.4} parent=0 // pred_check
    _
  $region35: #{mlp_layer_forward.4} parent=0 // pred_check_branch
    %251 = sbr.rel (0) target = $region37
  $region36: #{mlp_layer_forward.4} parent=0 // pred_region
    _
  $region37: #{mlp_layer_forward.4} parent=0 // pred_fallthru
    _
  // Predicated region
  $region38: #{mlp_layer_forward.4} parent=0 // pred_check
    _
  $region39: #{mlp_layer_forward.4} parent=0 // pred_check_branch
    %253 = sbr.rel (0) target = $region41
  $region40: #{mlp_layer_forward.4} parent=0 // pred_region
    _
  $region41: #{mlp_layer_forward.4} parent=0 // pred_fallthru
    _
  // Predicated region
  $region42: #{mlp_layer_forward.4} parent=0 // pred_check
    _
  $region43: #{mlp_layer_forward.4} parent=0 // pred_check_branch
    %255 = sbr.rel (0) target = $region45
  $region44: #{mlp_layer_forward.4} parent=0 // pred_region
    _
  $region45: #{mlp_layer_forward.4} parent=0 // pred_fallthru
    _
  // Predicated region
  $region46: #{mlp_layer_forward.4} parent=0 // pred_check
    _
  $region47: #{mlp_layer_forward.4} parent=0 // pred_check_branch
    %257 = sbr.rel (0) target = $region49
  $region48: #{mlp_layer_forward.4} parent=0 // pred_region
    _
  $region49: #{mlp_layer_forward.4} parent=0 // pred_fallthru
    _
  // Predicated region
  $region50: #{mlp_layer_forward.4} parent=0 // pred_check
    _
  $region51: #{mlp_layer_forward.4} parent=0 // pred_check_branch
    %259 = sbr.rel (0) target = $region53
  $region52: #{mlp_layer_forward.4} parent=0 // pred_region
    _
  $region53: #{mlp_layer_forward.4} parent=0 // pred_fallthru
    _

// kernel: mlp_layer_forward.5
$region0: #{mlp_layer_forward.5}
  #allocation0 [shape = 'u32[]', space=smem, size = 0x4, offset = 0x4, fixed_abs, tag = 'smem constant byte address 0x4 - core index']
  #allocation1 [shape = 'u32[144,128]{1,0:T(1,128)}', space=vmem, size = 0x12000, scoped, tag = 'internal scratch']
  %s0 = inlined_call_operand.vmem [shape: bf16[16,128], index: 0, kind: input, shape index: {}]
  %s1 = inlined_call_operand.vmem [shape: f32[1,128], index: 1, kind: input, shape index: {}]
  %s2 = inlined_call_operand.vmem [shape: f32[1,128], index: 2, kind: input, shape index: {}]
  %s3 = inlined_call_operand.vmem [shape: bf16[128,128], index: 3, kind: input, shape index: {}]
  %s4 = inlined_call_operand.vmem [shape: f32[1,128], index: 4, kind: input, shape index: {}]
  %s5 = inlined_call_operand.vmem [shape: f32[16,128], index: 5, kind: output, shape index: {}]
  %s6 = sld [smem:[#allocation0]]
  $region30: #{mlp_layer_forward.5} parent=0
    _
  %s8 = ssub.s32 1, %s6
  %s9 = scalar_select 0, %s8, %s6
  // Predicated region
  $region2: #{mlp_layer_forward.5} parent=0 // pred_check
    _
  $region3: #{mlp_layer_forward.5} parent=0 // pred_check_branch
    %11 = sbr.rel (0) target = $region5
  $region4: #{mlp_layer_forward.5} parent=0 // pred_region
    _
  $region5: #{mlp_layer_forward.5} parent=0 // pred_fallthru
    _
  // Predicated region
  $region6: #{mlp_layer_forward.5} parent=0 // pred_check
    _
  $region7: #{mlp_layer_forward.5} parent=0 // pred_check_branch
    %13 = sbr.rel (0) target = $region9
  $region8: #{mlp_layer_forward.5} parent=0 // pred_region
    _
  $region9: #{mlp_layer_forward.5} parent=0 // pred_fallthru
    _
  // Predicated region
  $region10: #{mlp_layer_forward.5} parent=0 // pred_check
    _
  $region11: #{mlp_layer_forward.5} parent=0 // pred_check_branch
    %15 = sbr.rel (0) target = $region13
  $region12: #{mlp_layer_forward.5} parent=0 // pred_region
    _
  $region13: #{mlp_layer_forward.5} parent=0 // pred_fallthru
    _
  // Predicated region
  $region14: #{mlp_layer_forward.5} parent=0 // pred_check
    _
  $region15: #{mlp_layer_forward.5} parent=0 // pred_check_branch
    %17 = sbr.rel (0) target = $region17
  $region16: #{mlp_layer_forward.5} parent=0 // pred_region
    _
  $region17: #{mlp_layer_forward.5} parent=0 // pred_fallthru
    _
  // Predicated region
  $region18: #{mlp_layer_forward.5} parent=0 // pred_check
    _
  $region19: #{mlp_layer_forward.5} parent=0 // pred_check_branch
    %19 = sbr.rel (0) target = $region21
  $region20: #{mlp_layer_forward.5} parent=0 // pred_region
    _
  $region21: #{mlp_layer_forward.5} parent=0 // pred_fallthru
    _
  %v21 = vld [vmem:[%s0] sm:$0xf]
  %v22 = vld [vmem:[%s0 + $0x4] sm:$0xf]
  %v23 = vunpack.c.l.bf16 %v21
  %v24 = vunpack.c.l.bf16 %v22
  %v25 = vld [vmem:[%s1] sm:$0x1]
  %v27 = vlaneseq
  %v28 = vshrl.u32 %v27, 7
  %v29 = vsub.s32 0, %v28
  %v30 = vrot.slane %v25, %v29
  %v32 = vmul.f32 %v23, %v30
  %v33 = vmul.f32 %v24, %v30
  %v34 = vld [vmem:[%s2] sm:$0x1]
  %v36 = vlaneseq
  %v37 = vshrl.u32 %v36, 7
  %v38 = vsub.s32 0, %v37
  %v39 = vrot.slane %v34, %v38
  %v41 = vadd.f32 %v32, %v39
  %v42 = vadd.f32 %v33, %v39
  %v43 = vpack.c.bf16 %v42, %v41
  %v44 = vld [vmem:[%s3] sm:$0xf]
  %v45 = vld [vmem:[%s3 + $0x4] sm:$0xf]
  %v46 = vld [vmem:[%s3 + $0x8] sm:$0xf]
  %v47 = vld [vmem:[%s3 + $0xc] sm:$0xf]
  %v48 = vld [vmem:[%s3 + $0x10] sm:$0xf]
  %v49 = vld [vmem:[%s3 + $0x14] sm:$0xf]
  %v50 = vld [vmem:[%s3 + $0x18] sm:$0xf]
  %v51 = vld [vmem:[%s3 + $0x1c] sm:$0xf]
  %v52 = vld [vmem:[%s3 + $0x20] sm:$0xf]
  %v53 = vld [vmem:[%s3 + $0x24] sm:$0xf]
  %v54 = vld [vmem:[%s3 + $0x28] sm:$0xf]
  %v55 = vld [vmem:[%s3 + $0x2c] sm:$0xf]
  %v56 = vld [vmem:[%s3 + $0x30] sm:$0xf]
  %v57 = vld [vmem:[%s3 + $0x34] sm:$0xf]
  %v58 = vld [vmem:[%s3 + $0x38] sm:$0xf]
  %v59 = vld [vmem:[%s3 + $0x3c] sm:$0xf]
  %v60 = vld [vmem:[%s4] sm:$0x1]
  %v62 = vlaneseq
  %v63 = vshrl.u32 %v62, 7
  %v64 = vsub.s32 0, %v63
  %v65 = vrot.slane %v60, %v64
  %v83 = vunpack.c.l.b16 %v44
  %v84 = vunpack.c.l.b16 %v45
  %v85 = vunpack.c.l.b16 %v46
  %v86 = vunpack.c.l.b16 %v47
  %v87 = vunpack.c.l.b16 %v48
  %v88 = vunpack.c.l.b16 %v49
  %v89 = vunpack.c.l.b16 %v50
  %v90 = vunpack.c.l.b16 %v51
  %v91 = vunpack.c.l.b16 %v52
  %v92 = vunpack.c.l.b16 %v53
  %v93 = vunpack.c.l.b16 %v54
  %v94 = vunpack.c.l.b16 %v55
  %v95 = vunpack.c.l.b16 %v56
  %v96 = vunpack.c.l.b16 %v57
  %v97 = vunpack.c.l.b16 %v58
  %v98 = vunpack.c.l.b16 %v59
  %v99 = vpack.c.b16 %v84, %v83
  %v100 = vpack.c.b16 %v86, %v85
  %v101 = vpack.c.b16 %v88, %v87
  %v102 = vpack.c.b16 %v90, %v89
  %v103 = vpack.c.b16 %v92, %v91
  %v104 = vpack.c.b16 %v94, %v93
  %v105 = vpack.c.b16 %v96, %v95
  %v106 = vpack.c.b16 %v98, %v97
  %115 = vmatprep.subr.bf16.mxu0 0
  %116 = vmatpush1.bf16.msra.mxu0 %v99
  %117 = vmatprep.subr.bf16.mxu0 0
  %118 = vmatpush1.bf16.msra.mxu0 %v100
  %119 = vmatprep.subr.bf16.mxu0 0
  %120 = vmatpush1.bf16.msra.mxu0 %v101
  %121 = vmatprep.subr.bf16.mxu0 0
  %122 = vmatpush1.bf16.msra.mxu0 %v102
  %123 = vmatprep.subr.bf16.mxu0 0
  %124 = vmatpush1.bf16.msra.mxu0 %v103
  %125 = vmatprep.subr.bf16.mxu0 0
  %126 = vmatpush1.bf16.msra.mxu0 %v104
  %127 = vmatprep.subr.bf16.mxu0 0
  %128 = vmatpush1.bf16.msra.mxu0 %v105
  %129 = vmatprep.subr.bf16.mxu0 0
  %130 = vmatpush1.bf16.msra.mxu0 %v106
  %131 = vmatprep.subr.bf16.mxu0 0
  %132 = vmatpush1.bf16.msra.mxu0 0
  %133 = vmatprep.subr.bf16.mxu0 0
  %134 = vmatpush1.bf16.msra.mxu0 0
  %135 = vmatprep.subr.bf16.mxu0 0
  %136 = vmatpush1.bf16.msra.mxu0 0
  %137 = vmatprep.subr.bf16.mxu0 0
  %138 = vmatpush1.bf16.msra.mxu0 0
  %139 = vmatprep.subr.bf16.mxu0 0
  %140 = vmatpush1.bf16.msra.mxu0 0
  %141 = vmatprep.subr.bf16.mxu0 0
  %142 = vmatpush1.bf16.msra.mxu0 0
  %143 = vmatprep.subr.bf16.mxu0 0
  %144 = vmatpush1.bf16.msra.mxu0 0
  %145 = vmatprep.subr.bf16.mxu0 0
  %146 = vmatpush1.bf16.msra.mxu0 0
  %147 = vmatprep.mubr.bf16.mxu0 0
  %148 = vmatmul.mubr.bf16.gmra.mrb[0].mxu0 %v43
  %v149 = vpop.f32.mrb[0].mxu0
  %v150 = vadd.f32 %v65, %v149
  %v151 = vpop.f32.mrb[0].mxu0
  %v152 = vpop.f32.mrb[0].mxu0
  %v153 = vadd.f32 %v65, %v152
  %v154 = vpop.f32.mrb[0].mxu0
  %155 = vdwg.mxu0
  %156 = vst [vmem:[%s5] sm:$0xff] %v150
  %157 = vst [vmem:[%s5 + $0x8] sm:$0xff] %v153
  // Predicated region
  $region22: #{mlp_layer_forward.5} parent=0 // pred_check
    _
  $region23: #{mlp_layer_forward.5} parent=0 // pred_check_branch
    %159 = sbr.rel (0) target = $region25
  $region24: #{mlp_layer_forward.5} parent=0 // pred_region
    _
  $region25: #{mlp_layer_forward.5} parent=0 // pred_fallthru
    _
  // Predicated region
  $region26: #{mlp_layer_forward.5} parent=0 // pred_check
    _
  $region27: #{mlp_layer_forward.5} parent=0 // pred_check_branch
    %161 = sbr.rel (0) target = $region29
  $region28: #{mlp_layer_forward.5} parent=0 // pred_region
    _
  $region29: #{mlp_layer_forward.5} parent=0 // pred_fallthru
    _

</llo_original>
